<compile_context>
chip_gen: v5e
topology: v5e:2x2
jax: 0.10.0
libtpu: 0.0.40
codegen_flags: <defaults>
</compile_context>

<pallas_src>
import functools
import math

import jax
import jax.numpy as jnp
from jax.experimental import pallas as pl
from jax.experimental.pallas import tpu as pltpu


# ---------------------------------------------------------------------------
# Kernel
# ---------------------------------------------------------------------------
def _contrastive_fused_kernel(
    x_ref,                 # (TB, TK)   flattened image tile (matmul dtype)
    wb_ref, bb_ref,        # backbone:  (TK, P) tile, (1, P) f32
    wl_ref, bl_ref,        # self.linear fused/padded: (P, P), (1, P)
    w1_ref, b1_ref,        # [wc1 | wh1] fused: (P, P), (1, P)
    w2_ref, b2_ref,        # [wc2 ; wn_norm] fused: (P, P), (1, P)
    out_ref,               # (TB, P) f32: lanes 0:F = normalized features, F:F+C = logits
    acc_ref,               # (TB, P) f32 VMEM scratch: backbone matmul accumulator
    *,
    feat_dim,
):
    k = pl.program_id(1)

    # ---- init accumulator on first K tile ----
    @pl.when(k == 0)
    def _():
        acc_ref[...] = jnp.zeros_like(acc_ref)

    # ---- backbone matmul, accumulated over the K-reduction grid axis ----
    acc_ref[...] += jnp.dot(
        x_ref[...], wb_ref[...], preferred_element_type=jnp.float32
    )

    # ---- rest of the network only on the last K tile ----
    @pl.when(k == pl.num_programs(1) - 1)
    def _():
        mm_dtype = wl_ref.dtype

        # backbone: flatten -> linear -> relu   (bias/relu in f32)
        h = jnp.maximum(acc_ref[...] + bb_ref[...], 0.0)

        # out = relu(self.linear(backbone(x)))   (mlp_number == 3)
        out = jnp.maximum(
            jnp.dot(h.astype(mm_dtype), wl_ref[...],
                    preferred_element_type=jnp.float32) + bl_ref[...],
            0.0,
        )

        # fused first layers of contrastive_head and classification_head:
        #   cg lanes 0:D   = relu(out @ wc1 + bc1)
        #   cg lanes D:D+F = relu(out @ wh1 + bh1)
        cg = jnp.maximum(
            jnp.dot(out.astype(mm_dtype), w1_ref[...],
                    preferred_element_type=jnp.float32) + b1_ref[...],
            0.0,
        )

        # fused second layers:
        #   fl lanes 0:F     = c @ wc2 + bc2            (features, pre-normalization)
        #   fl lanes F:F+C   = g @ wn_normalized + bn   (logits)
        fl = jnp.dot(cg.astype(mm_dtype), w2_ref[...],
                     preferred_element_type=jnp.float32) + b2_ref[...]

        # F.normalize(features, dim=1): normalize only the feature lanes.
        lane = jax.lax.broadcasted_iota(jnp.int32, fl.shape, 1)
        feat_mask = lane < feat_dim
        sumsq = jnp.sum(jnp.where(feat_mask, fl * fl, 0.0), axis=1, keepdims=True)
        inv_norm = jax.lax.rsqrt(jnp.maximum(sumsq, 1e-24))  # == 1 / max(||f||, 1e-12)
        out_ref[...] = jnp.where(feat_mask, fl * inv_norm, fl).astype(out_ref.dtype)


# ---------------------------------------------------------------------------
# Parameter preparation (fusion / padding / hoisted weight normalization)
# ---------------------------------------------------------------------------
def prepare_fused_params(params, *, lane_pad=128, matmul_dtype=jnp.bfloat16):
    """Pad + fuse the raw (in, out)-layout weights into lane-dense 128-wide slabs."""
    f32 = jnp.float32
    K, D = params["wb"].shape
    F = params["wc2"].shape[1]
    C = params["wn"].shape[1]
    P = lane_pad
    assert D <= P and D + F <= P and F + C <= P

    # NormalizedLinear: PyTorch (O, I) weight divided by its norm over dim=0 (the O axis).
    # In our (I, O) layout that is a per-row (axis=1) norm.  Hoisted out of the kernel.
    wn = params["wn"].astype(f32)
    wn_n = wn * jax.lax.rsqrt(
        jnp.maximum(jnp.sum(wn * wn, axis=1, keepdims=True), 1e-24)
    )

    Wb = jnp.zeros((K, P), f32).at[:, :D].set(params["wb"])
    Wl = jnp.zeros((P, P), f32).at[:D, :D].set(params["wl"])
    W1 = (jnp.zeros((P, P), f32)
          .at[:D, :D].set(params["wc1"])
          .at[:D, D:D + F].set(params["wh1"]))
    W2 = (jnp.zeros((P, P), f32)
          .at[:D, :F].set(params["wc2"])
          .at[D:D + F, F:F + C].set(wn_n))

    bb = jnp.zeros((1, P), f32).at[:, :D].set(params["bb"])
    bl = jnp.zeros((1, P), f32).at[:, :D].set(params["bl"])
    b1 = (jnp.zeros((1, P), f32)
          .at[:, :D].set(params["bc1"])
          .at[:, D:D + F].set(params["bh1"]))
    b2 = (jnp.zeros((1, P), f32)
          .at[:, :F].set(params["bc2"])
          .at[:, F:F + C].set(params["bn"]))

    return dict(
        Wb=Wb.astype(matmul_dtype), Wl=Wl.astype(matmul_dtype),
        W1=W1.astype(matmul_dtype), W2=W2.astype(matmul_dtype),
        bb=bb, bl=bl, b1=b1, b2=b2,
        K=K, D=D, F=F, C=C, P=P, matmul_dtype=matmul_dtype,
    )


# ---------------------------------------------------------------------------
# Forward wrapper
# ---------------------------------------------------------------------------
def _round_up(a, b):
    return (a + b - 1) // b * b


def contrastive_model_forward(x, fused):
    """x: (B, C, H, W) float32. Returns (features (B, F), logits (B, class_num))."""
    K, F, C, P = fused["K"], fused["F"], fused["C"], fused["P"]
    mm_dtype = fused["matmul_dtype"]

    B = x.shape[0]
    x_flat = x.reshape(B, -1)
    assert x_flat.shape[1] == K

    # Tile sizes: batch tile multiple of 8 sublanes, K tile multiple of 128 lanes.
    TB = min(128, _round_up(B, 8))
    TK = min(512, _round_up(K, 128))
    B_pad = _round_up(B, TB)
    K_pad = _round_up(K, TK)

    x_p = (jnp.zeros((B_pad, K_pad), mm_dtype)
           .at[:B, :K].set(x_flat.astype(mm_dtype)))
    Wb = fused["Wb"]
    if K_pad != K:
        Wb = jnp.zeros((K_pad, P), mm_dtype).at[:K, :].set(Wb)

    grid = (B_pad // TB, K_pad // TK)
    itemsize = jnp.dtype(mm_dtype).itemsize
    cost = pl.CostEstimate(
        flops=2 * B_pad * (K_pad * P + 3 * P * P),
        transcendentals=B_pad,
        bytes_accessed=(B_pad * K_pad * itemsize + K_pad * P * itemsize
                        + 3 * P * P * itemsize + 4 * P * 4 + B_pad * P * 4),
    )

    kernel = functools.partial(_contrastive_fused_kernel, feat_dim=F)

    slab = pl.pallas_call(
        kernel,
        out_shape=jax.ShapeDtypeStruct((B_pad, P), jnp.float32),
        grid_spec=pltpu.PrefetchScalarGridSpec(
            num_scalar_prefetch=0,
            grid=grid,
            in_specs=[
                pl.BlockSpec((TB, TK), lambda i, k: (i, k)),   # x tile
                pl.BlockSpec((TK, P), lambda i, k: (k, 0)),    # Wb tile
                pl.BlockSpec((1, P), lambda i, k: (0, 0)),     # bb
                pl.BlockSpec((P, P), lambda i, k: (0, 0)),     # Wl
                pl.BlockSpec((1, P), lambda i, k: (0, 0)),     # bl
                pl.BlockSpec((P, P), lambda i, k: (0, 0)),     # W1 = [wc1 | wh1]
                pl.BlockSpec((1, P), lambda i, k: (0, 0)),     # b1
                pl.BlockSpec((P, P), lambda i, k: (0, 0)),     # W2 = [wc2 ; wn_norm]
                pl.BlockSpec((1, P), lambda i, k: (0, 0)),     # b2
            ],
            out_specs=pl.BlockSpec((TB, P), lambda i, k: (i, 0)),
            scratch_shapes=[pltpu.VMEM((TB, P), jnp.float32)],
        ),
        compiler_params=pltpu.CompilerParams(
            dimension_semantics=("parallel", "arbitrary"),
            vmem_limit_bytes=32 * 1024 * 1024,
        ),
        cost_estimate=cost,
    )(x_p, Wb, fused["bb"], fused["Wl"], fused["bl"],
      fused["W1"], fused["b1"], fused["W2"], fused["b2"])

    features = slab[:B, :F]
    logits = slab[:B, F:F + C]
    return features, logits


# ---------------------------------------------------------------------------
# Init (mimics PyTorch default Linear init; weights stored (in, out))
# ---------------------------------------------------------------------------
def _uniform(key, shape, bound):
    return jax.random.uniform(key, shape, jnp.float32, -bound, bound)


def init_params(key, in_dim, backbone_dim, features_dim, class_num):
    keys = jax.random.split(key, 12)

    def linear_init(kw, kb, fan_in, fan_out):
        bound = 1.0 / math.sqrt(fan_in)
        return _uniform(kw, (fan_in, fan_out), bound), _uniform(kb, (1, fan_out), bound)

    wb, bb = linear_init(keys[0], keys[1], in_dim, backbone_dim)          # backbone linear
    wl, bl = linear_init(keys[2], keys[3], backbone_dim, backbone_dim)    # self.linear
    wc1, bc1 = linear_init(keys[4], keys[5], backbone_dim, backbone_dim)  # contrastive[0]
    wc2, bc2 = linear_init(keys[6], keys[7], backbone_dim, features_dim)  # contrastive[2]
    wh1, bh1 = linear_init(keys[8], keys[9], backbone_dim, features_dim)  # cls head[0]
    wn, bn = linear_init(keys[10], keys[11], features_dim, class_num)     # NormalizedLinear
    return dict(wb=wb, bb=bb, wl=wl, bl=bl, wc1=wc1, bc1=bc1,
                wc2=wc2, bc2=bc2, wh1=wh1, bh1=bh1, wn=wn, bn=bn)


# ---------------------------------------------------------------------------
# Pure-JAX f32 reference (mirrors the PyTorch module exactly)
# ---------------------------------------------------------------------------
def reference_forward(x, params):
    B = x.shape[0]
    xf = x.reshape(B, -1)
    h = jnp.maximum(xf @ params["wb"] + params["bb"], 0.0)
    out = jnp.maximum(h @ params["wl"] + params["bl"], 0.0)
    c = jnp.maximum(out @ params["wc1"] + params["bc1"], 0.0)
    f = c @ params["wc2"] + params["bc2"]
    f = f / jnp.maximum(jnp.linalg.norm(f, axis=1, keepdims=True), 1e-12)
    g = jnp.maximum(out @ params["wh1"] + params["bh1"], 0.0)
    wn = params["wn"]
    wn_n = wn / jnp.linalg.norm(wn, axis=1, keepdims=True)   # PyTorch dim=0 of (O,I)
    logits = g @ wn_n + params["bn"]
    return f, logits


if __name__ == "__main__":
    # batch=2, channels=4, spatial=16x16, backbone_dim=32, features_dim=16,
    # class_num=4 (fixed in module), mlp_number=3, cls_head_number=2, head='mlp'.
    B, C_in, H, W = 2, 4, 16, 16
    BACKBONE_DIM, FEATURES_DIM, CLASS_NUM = 32, 16, 4

    key = jax.random.PRNGKey(0)
    kx, kp = jax.random.split(key)
    x = jax.random.normal(kx, (B, C_in, H, W), jnp.float32)
    params = init_params(kp, C_in * H * W, BACKBONE_DIM, FEATURES_DIM, CLASS_NUM)

    fused = prepare_fused_params(params)  # bf16 matmul operands, f32 accumulation
    features, logits = contrastive_model_forward(x, fused)
    jax.block_until_ready((features, logits))

    assert features.shape == (B, FEATURES_DIM)
    assert logits.shape == (B, CLASS_NUM)
    # features are L2-normalized along dim=1
    assert jnp.allclose(jnp.sum(features * features, axis=1), 1.0, atol=5e-3)
    # compare against the f32 pure-JAX reference (loose tol for bf16 matmul operands)
    f_ref, l_ref = reference_forward(x, params)
    assert float(jnp.max(jnp.abs(features - f_ref))) < 5e-2
    assert float(jnp.max(jnp.abs(logits - l_ref))) < 5e-2
    print("KERNEL_OK")
</pallas_src>

<mosaic_0001>
module attributes {stable_mosaic.version = 11 : i64} {
  func.func @_contrastive_fused_kernel(%arg0: i32, %arg1: i32, %arg2: memref<8x512xbf16, #tpu.memory_space<vmem>>, %arg3: memref<512x128xbf16, #tpu.memory_space<vmem>>, %arg4: memref<1x128xf32, #tpu.memory_space<vmem>>, %arg5: memref<128x128xbf16, #tpu.memory_space<vmem>>, %arg6: memref<1x128xf32, #tpu.memory_space<vmem>>, %arg7: memref<128x128xbf16, #tpu.memory_space<vmem>>, %arg8: memref<1x128xf32, #tpu.memory_space<vmem>>, %arg9: memref<128x128xbf16, #tpu.memory_space<vmem>>, %arg10: memref<1x128xf32, #tpu.memory_space<vmem>>, %arg11: memref<8x128xf32, #tpu.memory_space<vmem>>, %arg12: memref<8x128xf32, #tpu.memory_space<vmem>>) attributes {dimension_semantics = [#tpu.dimension_semantics<parallel>, #tpu.dimension_semantics<arbitrary>], iteration_bounds = array<i64: 1, 2>, scalar_prefetch = 0 : i64, scratch_operands = 1 : i64, tpu.core_type = #tpu.core_type<tc>, window_params = [{transform_indices = @transform_0, window_bounds = array<i64: 8, 512>}, {transform_indices = @transform_1, window_bounds = array<i64: 512, 128>}, {pipeline_mode = #tpu.pipeline_mode<synchronous>, transform_indices = @transform_2, window_bounds = array<i64: 1, 128>}, {pipeline_mode = #tpu.pipeline_mode<synchronous>, transform_indices = @transform_3, window_bounds = array<i64: 128, 128>}, {pipeline_mode = #tpu.pipeline_mode<synchronous>, transform_indices = @transform_4, window_bounds = array<i64: 1, 128>}, {pipeline_mode = #tpu.pipeline_mode<synchronous>, transform_indices = @transform_5, window_bounds = array<i64: 128, 128>}, {pipeline_mode = #tpu.pipeline_mode<synchronous>, transform_indices = @transform_6, window_bounds = array<i64: 1, 128>}, {pipeline_mode = #tpu.pipeline_mode<synchronous>, transform_indices = @transform_7, window_bounds = array<i64: 128, 128>}, {pipeline_mode = #tpu.pipeline_mode<synchronous>, transform_indices = @transform_8, window_bounds = array<i64: 1, 128>}, {transform_indices = @transform_9, window_bounds = array<i64: 8, 128>}]} {
    %c0_i32 = arith.constant 0 : i32
    %0 = arith.cmpi eq, %arg1, %c0_i32 : i32
    %1 = arith.extui %0 : i1 to i32
    %c0_i32_0 = arith.constant 0 : i32
    %2 = arith.cmpi ne, %1, %c0_i32_0 : i32
    scf.if %2 {
      %cst_9 = arith.constant 0.000000e+00 : f32
      %12 = vector.broadcast %cst_9 : f32 to vector<8x128xf32>
      %c0_10 = arith.constant 0 : index
      %c0_11 = arith.constant 0 : index
      %13 = vector.load %arg12[%c0_10, %c0_11] : memref<8x128xf32, #tpu.memory_space<vmem>>, vector<8x128xf32>
      tpu.vector_store %arg12[%c0_10, %c0_11], %12 {strides = array<i32>} : memref<8x128xf32, #tpu.memory_space<vmem>>, vector<8x128xf32>,
    } else {
    }
    %c0 = arith.constant 0 : index
    %c0_1 = arith.constant 0 : index
    %3 = vector.load %arg12[%c0, %c0_1] : memref<8x128xf32, #tpu.memory_space<vmem>>, vector<8x128xf32>
    %c0_2 = arith.constant 0 : index
    %c0_3 = arith.constant 0 : index
    %4 = vector.load %arg2[%c0_2, %c0_3] : memref<8x512xbf16, #tpu.memory_space<vmem>>, vector<8x512xbf16>
    %c0_4 = arith.constant 0 : index
    %c0_5 = arith.constant 0 : index
    %5 = vector.load %arg3[%c0_4, %c0_5] : memref<512x128xbf16, #tpu.memory_space<vmem>>, vector<512x128xbf16>
    %cst = arith.constant dense<0.000000e+00> : vector<8x128xf32>
    %6 = tpu.matmul %4, %5, %cst {dimension_numbers = #tpu.dot_dimension_numbers<[1], [0], [0], [1], [0, 0, 1, 1], [], []>} : vector<8x512xbf16>, vector<512x128xbf16>, vector<8x128xf32> -> vector<8x128xf32>
    %7 = arith.addf %3, %6 : vector<8x128xf32>
    %c0_6 = arith.constant 0 : index
    %c0_7 = arith.constant 0 : index
    %8 = vector.load %arg12[%c0_6, %c0_7] : memref<8x128xf32, #tpu.memory_space<vmem>>, vector<8x128xf32>
    tpu.vector_store %arg12[%c0_6, %c0_7], %7 {strides = array<i32>} : memref<8x128xf32, #tpu.memory_space<vmem>>, vector<8x128xf32>,
    %c1_i32 = arith.constant 1 : i32
    %9 = arith.cmpi eq, %arg1, %c1_i32 : i32
    %10 = arith.extui %9 : i1 to i32
    %c0_i32_8 = arith.constant 0 : i32
    %11 = arith.cmpi ne, %10, %c0_i32_8 : i32
    scf.if %11 {
      %c0_9 = arith.constant 0 : index
      %c0_10 = arith.constant 0 : index
      %12 = vector.load %arg12[%c0_9, %c0_10] : memref<8x128xf32, #tpu.memory_space<vmem>>, vector<8x128xf32>
      %c0_11 = arith.constant 0 : index
      %c0_12 = arith.constant 0 : index
      %13 = vector.load %arg4[%c0_11, %c0_12] : memref<1x128xf32, #tpu.memory_space<vmem>>, vector<1x128xf32>
      %14 = vector.broadcast %13 : vector<1x128xf32> to vector<8x128xf32>
      %15 = arith.addf %12, %14 : vector<8x128xf32>
      %cst_13 = arith.constant 0.000000e+00 : f32
      %16 = vector.broadcast %cst_13 : f32 to vector<8x128xf32>
      %17 = arith.maximumf %15, %16 : vector<8x128xf32>
      %18 = arith.truncf %17 : vector<8x128xf32> to vector<8x128xbf16>
      %c0_14 = arith.constant 0 : index
      %c0_15 = arith.constant 0 : index
      %19 = vector.load %arg5[%c0_14, %c0_15] : memref<128x128xbf16, #tpu.memory_space<vmem>>, vector<128x128xbf16>
      %cst_16 = arith.constant dense<0.000000e+00> : vector<8x128xf32>
      %20 = tpu.matmul %18, %19, %cst_16 {dimension_numbers = #tpu.dot_dimension_numbers<[1], [0], [0], [1], [0, 0, 1, 1], [], []>} : vector<8x128xbf16>, vector<128x128xbf16>, vector<8x128xf32> -> vector<8x128xf32>
      %c0_17 = arith.constant 0 : index
      %c0_18 = arith.constant 0 : index
      %21 = vector.load %arg6[%c0_17, %c0_18] : memref<1x128xf32, #tpu.memory_space<vmem>>, vector<1x128xf32>
      %22 = vector.broadcast %21 : vector<1x128xf32> to vector<8x128xf32>
      %23 = arith.addf %20, %22 : vector<8x128xf32>
      %cst_19 = arith.constant 0.000000e+00 : f32
      %24 = vector.broadcast %cst_19 : f32 to vector<8x128xf32>
      %25 = arith.maximumf %23, %24 : vector<8x128xf32>
      %26 = arith.truncf %25 : vector<8x128xf32> to vector<8x128xbf16>
      %c0_20 = arith.constant 0 : index
      %c0_21 = arith.constant 0 : index
      %27 = vector.load %arg7[%c0_20, %c0_21] : memref<128x128xbf16, #tpu.memory_space<vmem>>, vector<128x128xbf16>
      %cst_22 = arith.constant dense<0.000000e+00> : vector<8x128xf32>
      %28 = tpu.matmul %26, %27, %cst_22 {dimension_numbers = #tpu.dot_dimension_numbers<[1], [0], [0], [1], [0, 0, 1, 1], [], []>} : vector<8x128xbf16>, vector<128x128xbf16>, vector<8x128xf32> -> vector<8x128xf32>
      %c0_23 = arith.constant 0 : index
      %c0_24 = arith.constant 0 : index
      %29 = vector.load %arg8[%c0_23, %c0_24] : memref<1x128xf32, #tpu.memory_space<vmem>>, vector<1x128xf32>
      %30 = vector.broadcast %29 : vector<1x128xf32> to vector<8x128xf32>
      %31 = arith.addf %28, %30 : vector<8x128xf32>
      %cst_25 = arith.constant 0.000000e+00 : f32
      %32 = vector.broadcast %cst_25 : f32 to vector<8x128xf32>
      %33 = arith.maximumf %31, %32 : vector<8x128xf32>
      %34 = arith.truncf %33 : vector<8x128xf32> to vector<8x128xbf16>
      %c0_26 = arith.constant 0 : index
      %c0_27 = arith.constant 0 : index
      %35 = vector.load %arg9[%c0_26, %c0_27] : memref<128x128xbf16, #tpu.memory_space<vmem>>, vector<128x128xbf16>
      %cst_28 = arith.constant dense<0.000000e+00> : vector<8x128xf32>
      %36 = tpu.matmul %34, %35, %cst_28 {dimension_numbers = #tpu.dot_dimension_numbers<[1], [0], [0], [1], [0, 0, 1, 1], [], []>} : vector<8x128xbf16>, vector<128x128xbf16>, vector<8x128xf32> -> vector<8x128xf32>
      %c0_29 = arith.constant 0 : index
      %c0_30 = arith.constant 0 : index
      %37 = vector.load %arg10[%c0_29, %c0_30] : memref<1x128xf32, #tpu.memory_space<vmem>>, vector<1x128xf32>
      %38 = vector.broadcast %37 : vector<1x128xf32> to vector<8x128xf32>
      %39 = arith.addf %36, %38 : vector<8x128xf32>
      %40 = tpu.iota {dimensions = array<i32: 1>} : vector<8x128xi32>
      %c16_i32 = arith.constant 16 : i32
      %41 = vector.broadcast %c16_i32 : i32 to vector<8x128xi32>
      %42 = arith.cmpi slt, %40, %41 : vector<8x128xi32>
      %43 = arith.mulf %39, %39 : vector<8x128xf32>
      %cst_31 = arith.constant 0.000000e+00 : f32
      %44 = vector.broadcast %cst_31 : f32 to vector<8x128xf32>
      %45 = arith.select %42, %43, %44 : vector<8x128xi1>, vector<8x128xf32>
      %cst_32 = arith.constant dense<0.000000e+00> : vector<8xf32>
      %46 = vector.multi_reduction <add>, %45, %cst_32 [1] : vector<8x128xf32> to vector<8xf32>
      %47 = vector.shape_cast %46 : vector<8xf32> to vector<8x1xf32>
      %cst_33 = arith.constant 1.000000e-24 : f32
      %48 = vector.broadcast %cst_33 : f32 to vector<8x1xf32>
      %49 = arith.maximumf %47, %48 : vector<8x1xf32>
      %50 = math.rsqrt %49 : vector<8x1xf32>
      %51 = vector.broadcast %50 : vector<8x1xf32> to vector<8x128xf32>
      %52 = arith.mulf %39, %51 : vector<8x128xf32>
      %53 = arith.select %42, %52, %39 : vector<8x128xi1>, vector<8x128xf32>
      %c0_34 = arith.constant 0 : index
      %c0_35 = arith.constant 0 : index
      %54 = vector.load %arg11[%c0_34, %c0_35] : memref<8x128xf32, #tpu.memory_space<vmem>>, vector<8x128xf32>
      tpu.vector_store %arg11[%c0_34, %c0_35], %53 {strides = array<i32>} : memref<8x128xf32, #tpu.memory_space<vmem>>, vector<8x128xf32>,
    } else {
    }
    return
  }
  func.func @transform_0(%arg0: i32, %arg1: i32) -> (i32, i32) {
    %c0_i32 = arith.constant 0 : i32
    return %arg0, %arg1 : i32, i32
  }
  func.func @transform_1(%arg0: i32, %arg1: i32) -> (i32, i32) {
    %c0_i32 = arith.constant 0 : i32
    %c0_i32_0 = arith.constant 0 : i32
    return %arg1, %c0_i32 : i32, i32
  }
  func.func @transform_2(%arg0: i32, %arg1: i32) -> (i32, i32) {
    %c0_i32 = arith.constant 0 : i32
    %c0_i32_0 = arith.constant 0 : i32
    %c0_i32_1 = arith.constant 0 : i32
    return %c0_i32, %c0_i32_0 : i32, i32
  }
  func.func @transform_3(%arg0: i32, %arg1: i32) -> (i32, i32) {
    %c0_i32 = arith.constant 0 : i32
    %c0_i32_0 = arith.constant 0 : i32
    %c0_i32_1 = arith.constant 0 : i32
    return %c0_i32, %c0_i32_0 : i32, i32
  }
  func.func @transform_4(%arg0: i32, %arg1: i32) -> (i32, i32) {
    %c0_i32 = arith.constant 0 : i32
    %c0_i32_0 = arith.constant 0 : i32
    %c0_i32_1 = arith.constant 0 : i32
    return %c0_i32, %c0_i32_0 : i32, i32
  }
  func.func @transform_5(%arg0: i32, %arg1: i32) -> (i32, i32) {
    %c0_i32 = arith.constant 0 : i32
    %c0_i32_0 = arith.constant 0 : i32
    %c0_i32_1 = arith.constant 0 : i32
    return %c0_i32, %c0_i32_0 : i32, i32
  }
  func.func @transform_6(%arg0: i32, %arg1: i32) -> (i32, i32) {
    %c0_i32 = arith.constant 0 : i32
    %c0_i32_0 = arith.constant 0 : i32
    %c0_i32_1 = arith.constant 0 : i32
    return %c0_i32, %c0_i32_0 : i32, i32
  }
  func.func @transform_7(%arg0: i32, %arg1: i32) -> (i32, i32) {
    %c0_i32 = arith.constant 0 : i32
    %c0_i32_0 = arith.constant 0 : i32
    %c0_i32_1 = arith.constant 0 : i32
    return %c0_i32, %c0_i32_0 : i32, i32
  }
  func.func @transform_8(%arg0: i32, %arg1: i32) -> (i32, i32) {
    %c0_i32 = arith.constant 0 : i32
    %c0_i32_0 = arith.constant 0 : i32
    %c0_i32_1 = arith.constant 0 : i32
    return %c0_i32, %c0_i32_0 : i32, i32
  }
  func.func @transform_9(%arg0: i32, %arg1: i32) -> (i32, i32) {
    %c0_i32 = arith.constant 0 : i32
    %c0_i32_0 = arith.constant 0 : i32
    return %arg0, %c0_i32 : i32, i32
  }
}

</mosaic_0001>

<llo_original>
// kernel: tpu_custom_call.1
$region0: #{tpu_custom_call.1}
  #allocation0 [shape = 'u32[]', space=smem, size = 0x4, offset = 0x4, fixed_abs, tag = 'smem constant byte address 0x4 - core index']
  #allocation1 [shape = 'u32[72,128]{1,0:T(1,128)}', space=vmem, size = 0x9000, scoped, tag = 'internal scratch']
  #allocation2 [shape = 'f32[8,128]{1,0:T(8,128)}', space=vmem, size = 0x1000, scoped, tag = 'scratch operand']
  %s0 = inlined_call_operand.hbm [shape: bf16[8,1024], index: 0, kind: input, shape index: {}]
  %s1 = inlined_call_operand.hbm [shape: bf16[1024,128], index: 1, kind: input, shape index: {}]
  %s2 = inlined_call_operand.vmem [shape: f32[1,128], index: 2, kind: input, shape index: {}]
  %s3 = inlined_call_operand.hbm [shape: bf16[128,128], index: 3, kind: input, shape index: {}]
  %s4 = inlined_call_operand.vmem [shape: f32[1,128], index: 4, kind: input, shape index: {}]
  %s5 = inlined_call_operand.hbm [shape: bf16[128,128], index: 5, kind: input, shape index: {}]
  %s6 = inlined_call_operand.vmem [shape: f32[1,128], index: 6, kind: input, shape index: {}]
  %s7 = inlined_call_operand.hbm [shape: bf16[128,128], index: 7, kind: input, shape index: {}]
  %s8 = inlined_call_operand.vmem [shape: f32[1,128], index: 8, kind: input, shape index: {}]
  %s9 = inlined_call_operand.hbm [shape: f32[8,128], index: 9, kind: output, shape index: {}]
  %s10 = sld [smem:[#allocation0]]
  $region97: #{tpu_custom_call.1} parent=0
    _
  %s12 = ssub.s32 1, %s10
  %s13 = scalar_select 0, %s12, %s10
  $region1: #{tpu_custom_call.1} parent=0
    #allocation3 [shape = 'u8[16384]{0}', space=vmem, size = 0x4000, scoped, tag = 'input window, operand 0']
    #allocation4 [shape = 's32[2]{0}', space=sflag, size = 0x8, scoped, tag = 'scoped memory for tpu_custom_call.1']
    #allocation5 [shape = 's32[2]{0}', space=sflag, size = 0x8, scoped, tag = 'scoped memory for tpu_custom_call.1']
    #allocation6 [shape = 'u8[262144]{0}', space=vmem, size = 0x40000, scoped, tag = 'input window, operand 1']
    #allocation7 [shape = 's32[2]{0}', space=sflag, size = 0x8, scoped, tag = 'scoped memory for tpu_custom_call.1']
    #allocation8 [shape = 'u8[32768]{0}', space=vmem, size = 0x8000, scoped, tag = 'input window, operand 3, single buffered']
    #allocation9 [shape = 'u8[32768]{0}', space=vmem, size = 0x8000, scoped, tag = 'input window, operand 5, single buffered']
    #allocation10 [shape = 's32[1]{0}', space=sflag, size = 0x4, scoped, tag = 'scoped memory for tpu_custom_call.1']
    #allocation11 [shape = 'u8[32768]{0}', space=vmem, size = 0x8000, scoped, tag = 'input window, operand 7, single buffered']
    #allocation12 [shape = 'u8[4096]{0}', space=vmem, size = 0x1000, scoped, tag = 'output window, operand 0, single buffered']
    %14 = vsyncpa [#allocation4], 0
    %s15 = scalar_lea.sflag [#allocation4], 1
    %16 = vsyncpa %s15, 0
    %17 = vsyncpa [#allocation7], 0
    %s18 = scalar_lea.sflag [#allocation7], 1
    %19 = vsyncpa %s18, 0
    %20 = vsyncpa [#allocation10], 0
    %21 = vsyncpa [#allocation5], 0
    loop: start=0, step=1, limit=4
    $region2: #{tpu_custom_call.1} parent=1 // loop_pre_header
      _
    $region3: #{tpu_custom_call.1} parent=1 // loop_header
      %s23 = sphi 0, %s27
      %p24 = scmp.ge.s32.totalorder %s23, 4
      %s30 = sphi 0, %s42
      %s31 = sphi 0, %s38
      %s32 = sphi 0, %s30
      %s33 = sphi 0, %s31
      %s34 = sphi 0, %s32
      %s35 = sphi 0, %s33
      %s47 = sphi 0, %s49
      %s50 = sphi 0, %s47
      %s51 = sphi 0, %s50
      %s67 = sphi 0, %s51
      %s73 = sphi 0, %s75
      %s76 = sphi 0, %s73
      %s77 = sphi 0, %s76
      %s93 = sphi 0, %s77
      %s97 = sphi 0, %s97
      %s99 = sphi 0, %s97
      %s100 = sphi 0, %s99
      %s114 = sphi 0, %s100
      %s118 = sphi 0, %s118
      %s120 = sphi 0, %s118
      %s121 = sphi 0, %s120
      %s135 = sphi 0, %s121
      %s139 = sphi 0, %s139
      %s141 = sphi 0, %s139
      %s142 = sphi 0, %s141
      %s156 = sphi 0, %s142
      %s160 = sphi 0, %s160
      %s162 = sphi 0, %s160
      %s163 = sphi 0, %s162
      %s177 = sphi 0, %s163
      %s181 = sphi 0, %s181
      %s183 = sphi 0, %s181
      %s184 = sphi 0, %s183
      %s198 = sphi 0, %s184
      %s202 = sphi 0, %s202
      %s204 = sphi 0, %s202
      %s205 = sphi 0, %s204
      %s219 = sphi 0, %s205
      %s223 = sphi 0, %s223
      %s225 = sphi 0, %s223
      %s226 = sphi 0, %s225
      %s240 = sphi 0, %s226
      %s246 = sphi 0, %s248
      %s249 = sphi 0, %s246
      %s250 = sphi 0, %s249
      %s266 = sphi 0, %s250
    $region4: #{tpu_custom_call.1} parent=1 // loop_header_branch
      %26 = sbr.rel (%p24) target = $region8
    $region5: #{tpu_custom_call.1} parent=1 // loop_body
      %s28 = ssub.s32 %s23, 1
      %s29 = ssub.s32 %s23, 2
      %s36 = sadd.s32 1, %s31
      %p37 = scmp.ge.s32.totalorder %s36, 2
      %s38 = scalar_select %p37, 0, %s36
      %s39 = sadd.s32 1, %s30
      %s40 = scalar_select %p37, %s39, %s30
      %p41 = scmp.ge.s32.totalorder %s40, 1
      %s42 = scalar_select %p41, 0, %s40
      %s43 = ssub.s32 %s30, %s42
      %s44 = ssub.s32 %s31, %s38
      %s45 = sor.u32 %s43, %s44
      %p46 = scmp.eq.s32.totalorder %s45, 0
      %s48 = sadd.s32 %s47, 1
      %s49 = scalar_select %p46, %s47, %s48
      %p52 = pneg %p46
      %p53 = scmp.eq.s32.totalorder %s23, 1
      %p54 = por %p52, %p53
      %p55 = scmp.ne.s32.totalorder %s47, %s50
      %p56 = scmp.eq.s32.totalorder %s23, 0
      %p57 = por %p55, %p56
      %p58 = scmp.ne.s32.totalorder %s47, %s50
      %p59 = scmp.eq.s32.totalorder %s28, 1
      %p60 = por %p58, %p59
      %p61 = scmp.ne.s32.totalorder %s50, %s51
      %p62 = scmp.eq.s32.totalorder %s28, 0
      %p63 = por %p61, %p62
      %p64 = scmp.ne.s32.totalorder %s50, %s51
      %p65 = scmp.eq.s32.totalorder %s29, 1
      %p66 = por %p64, %p65
      %p68 = scmp.ne.s32.totalorder %s51, %s67
      %p69 = scmp.eq.s32.totalorder %s29, 0
      %p70 = por %p68, %p69
      %s71 = ssub.s32 %s31, %s38
      %p72 = scmp.eq.s32.totalorder %s71, 0
      %s74 = sadd.s32 %s73, 1
      %s75 = scalar_select %p72, %s73, %s74
      %p78 = pneg %p72
      %p79 = scmp.eq.s32.totalorder %s23, 1
      %p80 = por %p78, %p79
      %p81 = scmp.ne.s32.totalorder %s73, %s76
      %p82 = scmp.eq.s32.totalorder %s23, 0
      %p83 = por %p81, %p82
      %p84 = scmp.ne.s32.totalorder %s73, %s76
      %p85 = scmp.eq.s32.totalorder %s28, 1
      %p86 = por %p84, %p85
      %p87 = scmp.ne.s32.totalorder %s76, %s77
      %p88 = scmp.eq.s32.totalorder %s28, 0
      %p89 = por %p87, %p88
      %p90 = scmp.ne.s32.totalorder %s76, %s77
      %p91 = scmp.eq.s32.totalorder %s29, 1
      %p92 = por %p90, %p91
      %p94 = scmp.ne.s32.totalorder %s77, %s93
      %p95 = scmp.eq.s32.totalorder %s29, 0
      %p96 = por %p94, %p95
      %s98 = sadd.s32 %s97, 1
      %p101 = scmp.eq.s32.totalorder %s23, 1
      %p102 = scmp.ne.s32.totalorder %s97, %s99
      %p103 = scmp.eq.s32.totalorder %s23, 0
      %p104 = por %p102, %p103
      %p105 = scmp.ne.s32.totalorder %s97, %s99
      %p106 = scmp.eq.s32.totalorder %s28, 1
      %p107 = por %p105, %p106
      %p108 = scmp.ne.s32.totalorder %s99, %s100
      %p109 = scmp.eq.s32.totalorder %s28, 0
      %p110 = por %p108, %p109
      %p111 = scmp.ne.s32.totalorder %s99, %s100
      %p112 = scmp.eq.s32.totalorder %s29, 1
      %p113 = por %p111, %p112
      %p115 = scmp.ne.s32.totalorder %s100, %s114
      %p116 = scmp.eq.s32.totalorder %s29, 0
      %p117 = por %p115, %p116
      %s119 = sadd.s32 %s118, 1
      %p122 = scmp.eq.s32.totalorder %s23, 1
      %p123 = scmp.ne.s32.totalorder %s118, %s120
      %p124 = scmp.eq.s32.totalorder %s23, 0
      %p125 = por %p123, %p124
      %p126 = scmp.ne.s32.totalorder %s118, %s120
      %p127 = scmp.eq.s32.totalorder %s28, 1
      %p128 = por %p126, %p127
      %p129 = scmp.ne.s32.totalorder %s120, %s121
      %p130 = scmp.eq.s32.totalorder %s28, 0
      %p131 = por %p129, %p130
      %p132 = scmp.ne.s32.totalorder %s120, %s121
      %p133 = scmp.eq.s32.totalorder %s29, 1
      %p134 = por %p132, %p133
      %p136 = scmp.ne.s32.totalorder %s121, %s135
      %p137 = scmp.eq.s32.totalorder %s29, 0
      %p138 = por %p136, %p137
      %s140 = sadd.s32 %s139, 1
      %p143 = scmp.eq.s32.totalorder %s23, 1
      %p144 = scmp.ne.s32.totalorder %s139, %s141
      %p145 = scmp.eq.s32.totalorder %s23, 0
      %p146 = por %p144, %p145
      %p147 = scmp.ne.s32.totalorder %s139, %s141
      %p148 = scmp.eq.s32.totalorder %s28, 1
      %p149 = por %p147, %p148
      %p150 = scmp.ne.s32.totalorder %s141, %s142
      %p151 = scmp.eq.s32.totalorder %s28, 0
      %p152 = por %p150, %p151
      %p153 = scmp.ne.s32.totalorder %s141, %s142
      %p154 = scmp.eq.s32.totalorder %s29, 1
      %p155 = por %p153, %p154
      %p157 = scmp.ne.s32.totalorder %s142, %s156
      %p158 = scmp.eq.s32.totalorder %s29, 0
      %p159 = por %p157, %p158
      %s161 = sadd.s32 %s160, 1
      %p164 = scmp.eq.s32.totalorder %s23, 1
      %p165 = scmp.ne.s32.totalorder %s160, %s162
      %p166 = scmp.eq.s32.totalorder %s23, 0
      %p167 = por %p165, %p166
      %p168 = scmp.ne.s32.totalorder %s160, %s162
      %p169 = scmp.eq.s32.totalorder %s28, 1
      %p170 = por %p168, %p169
      %p171 = scmp.ne.s32.totalorder %s162, %s163
      %p172 = scmp.eq.s32.totalorder %s28, 0
      %p173 = por %p171, %p172
      %p174 = scmp.ne.s32.totalorder %s162, %s163
      %p175 = scmp.eq.s32.totalorder %s29, 1
      %p176 = por %p174, %p175
      %p178 = scmp.ne.s32.totalorder %s163, %s177
      %p179 = scmp.eq.s32.totalorder %s29, 0
      %p180 = por %p178, %p179
      %s182 = sadd.s32 %s181, 1
      %p185 = scmp.eq.s32.totalorder %s23, 1
      %p186 = scmp.ne.s32.totalorder %s181, %s183
      %p187 = scmp.eq.s32.totalorder %s23, 0
      %p188 = por %p186, %p187
      %p189 = scmp.ne.s32.totalorder %s181, %s183
      %p190 = scmp.eq.s32.totalorder %s28, 1
      %p191 = por %p189, %p190
      %p192 = scmp.ne.s32.totalorder %s183, %s184
      %p193 = scmp.eq.s32.totalorder %s28, 0
      %p194 = por %p192, %p193
      %p195 = scmp.ne.s32.totalorder %s183, %s184
      %p196 = scmp.eq.s32.totalorder %s29, 1
      %p197 = por %p195, %p196
      %p199 = scmp.ne.s32.totalorder %s184, %s198
      %p200 = scmp.eq.s32.totalorder %s29, 0
      %p201 = por %p199, %p200
      %s203 = sadd.s32 %s202, 1
      %p206 = scmp.eq.s32.totalorder %s23, 1
      %p207 = scmp.ne.s32.totalorder %s202, %s204
      %p208 = scmp.eq.s32.totalorder %s23, 0
      %p209 = por %p207, %p208
      %p210 = scmp.ne.s32.totalorder %s202, %s204
      %p211 = scmp.eq.s32.totalorder %s28, 1
      %p212 = por %p210, %p211
      %p213 = scmp.ne.s32.totalorder %s204, %s205
      %p214 = scmp.eq.s32.totalorder %s28, 0
      %p215 = por %p213, %p214
      %p216 = scmp.ne.s32.totalorder %s204, %s205
      %p217 = scmp.eq.s32.totalorder %s29, 1
      %p218 = por %p216, %p217
      %p220 = scmp.ne.s32.totalorder %s205, %s219
      %p221 = scmp.eq.s32.totalorder %s29, 0
      %p222 = por %p220, %p221
      %s224 = sadd.s32 %s223, 1
      %p227 = scmp.eq.s32.totalorder %s23, 1
      %p228 = scmp.ne.s32.totalorder %s223, %s225
      %p229 = scmp.eq.s32.totalorder %s23, 0
      %p230 = por %p228, %p229
      %p231 = scmp.ne.s32.totalorder %s223, %s225
      %p232 = scmp.eq.s32.totalorder %s28, 1
      %p233 = por %p231, %p232
      %p234 = scmp.ne.s32.totalorder %s225, %s226
      %p235 = scmp.eq.s32.totalorder %s28, 0
      %p236 = por %p234, %p235
      %p237 = scmp.ne.s32.totalorder %s225, %s226
      %p238 = scmp.eq.s32.totalorder %s29, 1
      %p239 = por %p237, %p238
      %p241 = scmp.ne.s32.totalorder %s226, %s240
      %p242 = scmp.eq.s32.totalorder %s29, 0
      %p243 = por %p241, %p242
      %s244 = ssub.s32 %s30, %s42
      %p245 = scmp.eq.s32.totalorder %s244, 0
      %s247 = sadd.s32 %s246, 1
      %s248 = scalar_select %p245, %s246, %s247
      %p251 = pneg %p245
      %p252 = scmp.eq.s32.totalorder %s23, 1
      %p253 = por %p251, %p252
      %p254 = scmp.ne.s32.totalorder %s246, %s249
      %p255 = scmp.eq.s32.totalorder %s23, 0
      %p256 = por %p254, %p255
      %p257 = scmp.ne.s32.totalorder %s246, %s249
      %p258 = scmp.eq.s32.totalorder %s28, 1
      %p259 = por %p257, %p258
      %p260 = scmp.ne.s32.totalorder %s249, %s250
      %p261 = scmp.eq.s32.totalorder %s28, 0
      %p262 = por %p260, %p261
      %p263 = scmp.ne.s32.totalorder %s249, %s250
      %p264 = scmp.eq.s32.totalorder %s29, 1
      %p265 = por %p263, %p264
      %p267 = scmp.ne.s32.totalorder %s250, %s266
      %p268 = scmp.eq.s32.totalorder %s29, 0
      %p269 = por %p267, %p268
      %p270 = scmp.le.s32.totalorder 1, %s23
      %p271 = scmp.lt.s32.totalorder %s23, 3
      %p272 = pnand %p270, %p271
      %p273 = pneg %p272
      // Predicated region
      $region9: #{tpu_custom_call.1} parent=5 // pred_check
        _
      $region10: #{tpu_custom_call.1} parent=5 // pred_check_branch
        %275 = sbr.rel (%p272) target = $region12
      $region11: #{tpu_custom_call.1} parent=5 // pred_region
        %s276 = ssub.s32 %s23, 1
        // Predicated region
        $region13: #{tpu_custom_call.1} parent=11 // pred_check
          %p277 = pneg %p110
        $region14: #{tpu_custom_call.1} parent=11 // pred_check_branch
          %279 = sbr.rel (%p277) target = $region16
        $region15: #{tpu_custom_call.1} parent=11 // pred_region
          _
        $region16: #{tpu_custom_call.1} parent=11 // pred_fallthru
          _
        // Predicated region
        $region17: #{tpu_custom_call.1} parent=11 // pred_check
          %p280 = pneg %p131
        $region18: #{tpu_custom_call.1} parent=11 // pred_check_branch
          %282 = sbr.rel (%p280) target = $region20
        $region19: #{tpu_custom_call.1} parent=11 // pred_region
          %284 = vsyncadd [#allocation7], 0
          %s285 = sshll.u32 %s3, 4
          %s286 = int_to_ptr.hbm [resolvable:$true] %s285
          %s287 = sshll.u32 [#allocation8], 4
          %s288 = int_to_ptr.vmem [resolvable:$true] %s287
          %293 = dma.hbm_to_vmem [thread:$0]  %s286, 1024, %s288, [#allocation7], 64, 64, 4
        $region20: #{tpu_custom_call.1} parent=11 // pred_fallthru
          _
        // Predicated region
        $region21: #{tpu_custom_call.1} parent=11 // pred_check
          %p294 = pneg %p152
        $region22: #{tpu_custom_call.1} parent=11 // pred_check_branch
          %296 = sbr.rel (%p294) target = $region24
        $region23: #{tpu_custom_call.1} parent=11 // pred_region
          _
        $region24: #{tpu_custom_call.1} parent=11 // pred_fallthru
          _
        // Predicated region
        $region25: #{tpu_custom_call.1} parent=11 // pred_check
          %p297 = pneg %p173
        $region26: #{tpu_custom_call.1} parent=11 // pred_check_branch
          %299 = sbr.rel (%p297) target = $region28
        $region27: #{tpu_custom_call.1} parent=11 // pred_region
          %301 = vsyncadd [#allocation10], 0
          %s302 = sshll.u32 %s5, 4
          %s303 = int_to_ptr.hbm [resolvable:$true] %s302
          %s304 = sshll.u32 [#allocation9], 4
          %s305 = int_to_ptr.vmem [resolvable:$true] %s304
          %310 = dma.hbm_to_vmem [thread:$0]  %s303, 1024, %s305, [#allocation10], 64, 64, 4
        $region28: #{tpu_custom_call.1} parent=11 // pred_fallthru
          _
        // Predicated region
        $region29: #{tpu_custom_call.1} parent=11 // pred_check
          %p311 = pneg %p194
        $region30: #{tpu_custom_call.1} parent=11 // pred_check_branch
          %313 = sbr.rel (%p311) target = $region32
        $region31: #{tpu_custom_call.1} parent=11 // pred_region
          _
        $region32: #{tpu_custom_call.1} parent=11 // pred_fallthru
          _
        // Predicated region
        $region33: #{tpu_custom_call.1} parent=11 // pred_check
          %p314 = pneg %p215
        $region34: #{tpu_custom_call.1} parent=11 // pred_check_branch
          %316 = sbr.rel (%p314) target = $region36
        $region35: #{tpu_custom_call.1} parent=11 // pred_region
          %318 = vsyncadd [#allocation10], 0
          %s319 = sshll.u32 %s7, 4
          %s320 = int_to_ptr.hbm [resolvable:$true] %s319
          %s321 = sshll.u32 [#allocation11], 4
          %s322 = int_to_ptr.vmem [resolvable:$true] %s321
          %327 = dma.hbm_to_vmem [thread:$0]  %s320, 1024, %s322, [#allocation10], 64, 64, 4
        $region36: #{tpu_custom_call.1} parent=11 // pred_fallthru
          _
        // Predicated region
        $region37: #{tpu_custom_call.1} parent=11 // pred_check
          %p328 = pneg %p236
        $region38: #{tpu_custom_call.1} parent=11 // pred_check_branch
          %330 = sbr.rel (%p328) target = $region40
        $region39: #{tpu_custom_call.1} parent=11 // pred_region
          _
        $region40: #{tpu_custom_call.1} parent=11 // pred_fallthru
          _
      $region12: #{tpu_custom_call.1} parent=5 // pred_fallthru
        _
      %p331 = scmp.lt.s32.totalorder %s23, 2
      // Predicated region
      $region41: #{tpu_custom_call.1} parent=5 // pred_check
        %p332 = pneg %p331
      $region42: #{tpu_custom_call.1} parent=5 // pred_check_branch
        %334 = sbr.rel (%p332) target = $region44
      $region43: #{tpu_custom_call.1} parent=5 // pred_region
        // Predicated region
        $region45: #{tpu_custom_call.1} parent=43 // pred_check
          %p335 = pneg %p57
        $region46: #{tpu_custom_call.1} parent=43 // pred_check_branch
          %337 = sbr.rel (%p335) target = $region48
        $region47: #{tpu_custom_call.1} parent=43 // pred_region
          %s338 = sand.u32 %s47, 1
          %s339 = scalar_lea.sflag [#allocation4], %s338
          %s340 = sand.u32 %s47, 1
          %s341 = smul.addr %s340, 16
          %s342 = scalar_lea.vmem [#allocation3], %s341
          %s343 = smul.u32 4, %s31
          %345 = vsyncadd %s339, 0
          %s346 = smul.addr %s30, 8
          %s347 = sadd.s32 %s343, %s346
          %s348 = smul.addr %s347, 4
          %s349 = scalar_lea.hbm %s0, %s348
          %s351 = sshll.u32 %s349, 4
          %s352 = int_to_ptr.hbm [resolvable:$true] %s351
          %s353 = sshll.u32 %s342, 4
          %s354 = int_to_ptr.vmem [resolvable:$true] %s353
          %356 = dma.hbm_to_vmem [thread:$0]  %s352, 256, %s354, %s339
        $region48: #{tpu_custom_call.1} parent=43 // pred_fallthru
          _
        // Predicated region
        $region49: #{tpu_custom_call.1} parent=43 // pred_check
          %p357 = pneg %p83
        $region50: #{tpu_custom_call.1} parent=43 // pred_check_branch
          %359 = sbr.rel (%p357) target = $region52
        $region51: #{tpu_custom_call.1} parent=43 // pred_region
          %s360 = sand.u32 %s23, 1
          %s361 = scalar_lea.sflag [#allocation7], %s360
          %s362 = sand.u32 %s73, 1
          %s363 = smul.addr %s362, 256
          %s364 = scalar_lea.vmem [#allocation6], %s363
          %s365 = smul.u32 64, %s31
          %367 = vsyncadd %s361, 0
          %s368 = smul.addr %s365, 4
          %s369 = scalar_lea.hbm %s1, %s368
          %s370 = sshll.u32 %s369, 4
          %s371 = int_to_ptr.hbm [resolvable:$true] %s370
          %s372 = sshll.u32 %s364, 4
          %s373 = int_to_ptr.vmem [resolvable:$true] %s372
          %378 = dma.hbm_to_vmem [thread:$0]  %s371, 4096, %s373, %s361, 64, 64, 4
        $region52: #{tpu_custom_call.1} parent=43 // pred_fallthru
          _
      $region44: #{tpu_custom_call.1} parent=5 // pred_fallthru
        _
      %p379 = scmp.le.s32.totalorder 1, %s23
      %p380 = scmp.lt.s32.totalorder %s23, 3
      %p381 = pnand %p379, %p380
      %p382 = pneg %p381
      // Predicated region
      $region53: #{tpu_custom_call.1} parent=5 // pred_check
        _
      $region54: #{tpu_custom_call.1} parent=5 // pred_check_branch
        %384 = sbr.rel (%p381) target = $region56
      $region55: #{tpu_custom_call.1} parent=5 // pred_region
        %s385 = ssub.s32 %s23, 1
        %s386 = sand.u32 %s50, 1
        %s387 = scalar_lea.sflag [#allocation4], %s386
        %s388 = sand.u32 %s50, 1
        %s389 = smul.addr %s388, 16
        %s390 = scalar_lea.vmem [#allocation3], %s389
        // Predicated region
        $region57: #{tpu_custom_call.1} parent=55 // pred_check
          %p391 = pneg %p63
        $region58: #{tpu_custom_call.1} parent=55 // pred_check_branch
          %393 = sbr.rel (%p391) target = $region60
        $region59: #{tpu_custom_call.1} parent=55 // pred_region
          %395 = dma.done %s387, 256
        $region60: #{tpu_custom_call.1} parent=55 // pred_fallthru
          _
        %s396 = sand.u32 %s28, 1
        %s397 = scalar_lea.sflag [#allocation7], %s396
        %s398 = sand.u32 %s76, 1
        %s399 = smul.addr %s398, 256
        %s400 = scalar_lea.vmem [#allocation6], %s399
        // Predicated region
        $region61: #{tpu_custom_call.1} parent=55 // pred_check
          %p401 = pneg %p89
        $region62: #{tpu_custom_call.1} parent=55 // pred_check_branch
          %403 = sbr.rel (%p401) target = $region64
        $region63: #{tpu_custom_call.1} parent=55 // pred_region
          %405 = dma.done %s397, 4096
        $region64: #{tpu_custom_call.1} parent=55 // pred_fallthru
          _
        // Predicated region
        $region65: #{tpu_custom_call.1} parent=55 // pred_check
          %p406 = pneg %p131
        $region66: #{tpu_custom_call.1} parent=55 // pred_check_branch
          %408 = sbr.rel (%p406) target = $region68
        $region67: #{tpu_custom_call.1} parent=55 // pred_region
          %410 = dma.done [#allocation7], 1024
        $region68: #{tpu_custom_call.1} parent=55 // pred_fallthru
          _
        // Predicated region
        $region69: #{tpu_custom_call.1} parent=55 // pred_check
          %p411 = pneg %p173
        $region70: #{tpu_custom_call.1} parent=55 // pred_check_branch
          %413 = sbr.rel (%p411) target = $region72
        $region71: #{tpu_custom_call.1} parent=55 // pred_region
          %415 = dma.done [#allocation10], 1024
        $region72: #{tpu_custom_call.1} parent=55 // pred_fallthru
          _
        // Predicated region
        $region73: #{tpu_custom_call.1} parent=55 // pred_check
          %p416 = pneg %p215
        $region74: #{tpu_custom_call.1} parent=55 // pred_check_branch
          %418 = sbr.rel (%p416) target = $region76
        $region75: #{tpu_custom_call.1} parent=55 // pred_region
          %420 = dma.done [#allocation10], 1024
        $region76: #{tpu_custom_call.1} parent=55 // pred_fallthru
          _
        %s421 = sand.u32 %s50, 1
        %s422 = scalar_lea.sflag [#allocation4], %s421
        %s423 = sand.u32 %s50, 1
        %s424 = smul.addr %s423, 16
        %s425 = scalar_lea.vmem [#allocation3], %s424
        %p426 = pneg %p63
        %p427 = pneg %p60
        %s428 = sand.u32 %s28, 1
        %s429 = scalar_lea.sflag [#allocation7], %s428
        %s430 = sand.u32 %s76, 1
        %s431 = smul.addr %s430, 256
        %s432 = scalar_lea.vmem [#allocation6], %s431
        %p433 = pneg %p89
        %p434 = pneg %p86
        %p435 = pneg %p110
        %p436 = pneg %p107
        %p437 = pneg %p131
        %p438 = pneg %p128
        %p439 = pneg %p152
        %p440 = pneg %p149
        %p441 = pneg %p173
        %p442 = pneg %p170
        %p443 = pneg %p194
        %p444 = pneg %p191
        %p445 = pneg %p215
        %p446 = pneg %p212
        %p447 = pneg %p236
        %p448 = pneg %p233
        %p449 = pneg %p262
        %p450 = pneg %p259
        %s451 = smul.u32 4, %s33
        %s452 = smul.u32 64, %s33
        %p453 = scmp.eq.s32.totalorder %s33, 0
        // Predicated region
        $region77: #{tpu_custom_call.1} parent=55 // pred_check
          %p454 = pneg %p453
        $region78: #{tpu_custom_call.1} parent=55 // pred_check_branch
          %456 = sbr.rel (%p454) target = $region80
        $region79: #{tpu_custom_call.1} parent=55 // pred_region
          %457 = vst [vmem:[#allocation2] sm:$0xff] 0.0
        $region80: #{tpu_custom_call.1} parent=55 // pred_fallthru
          _
        %v458 = vld [vmem:[#allocation2] sm:$0xff]
        %v459 = vld [vmem:[%s390] sm:$0xff]
        %v460 = vld [vmem:[%s390 + $0x8] sm:$0xff]
        %v461 = vld [vmem:[%s400] sm:$0xf]
        %v462 = vld [vmem:[%s400 + $0x4] sm:$0xf]
        %v463 = vld [vmem:[%s400 + $0x8] sm:$0xf]
        %v464 = vld [vmem:[%s400 + $0xc] sm:$0xf]
        %v465 = vld [vmem:[%s400 + $0x10] sm:$0xf]
        %v466 = vld [vmem:[%s400 + $0x14] sm:$0xf]
        %v467 = vld [vmem:[%s400 + $0x18] sm:$0xf]
        %v468 = vld [vmem:[%s400 + $0x1c] sm:$0xf]
        %v469 = vld [vmem:[%s400 + $0x20] sm:$0xf]
        %v470 = vld [vmem:[%s400 + $0x24] sm:$0xf]
        %v471 = vld [vmem:[%s400 + $0x28] sm:$0xf]
        %v472 = vld [vmem:[%s400 + $0x2c] sm:$0xf]
        %v473 = vld [vmem:[%s400 + $0x30] sm:$0xf]
        %v474 = vld [vmem:[%s400 + $0x34] sm:$0xf]
        %v475 = vld [vmem:[%s400 + $0x38] sm:$0xf]
        %v476 = vld [vmem:[%s400 + $0x3c] sm:$0xf]
        %v477 = vld [vmem:[%s400 + $0x40] sm:$0xf]
        %v478 = vld [vmem:[%s400 + $0x44] sm:$0xf]
        %v479 = vld [vmem:[%s400 + $0x48] sm:$0xf]
        %v480 = vld [vmem:[%s400 + $0x4c] sm:$0xf]
        %v481 = vld [vmem:[%s400 + $0x50] sm:$0xf]
        %v482 = vld [vmem:[%s400 + $0x54] sm:$0xf]
        %v483 = vld [vmem:[%s400 + $0x58] sm:$0xf]
        %v484 = vld [vmem:[%s400 + $0x5c] sm:$0xf]
        %v485 = vld [vmem:[%s400 + $0x60] sm:$0xf]
        %v486 = vld [vmem:[%s400 + $0x64] sm:$0xf]
        %v487 = vld [vmem:[%s400 + $0x68] sm:$0xf]
        %v488 = vld [vmem:[%s400 + $0x6c] sm:$0xf]
        %v489 = vld [vmem:[%s400 + $0x70] sm:$0xf]
        %v490 = vld [vmem:[%s400 + $0x74] sm:$0xf]
        %v491 = vld [vmem:[%s400 + $0x78] sm:$0xf]
        %v492 = vld [vmem:[%s400 + $0x7c] sm:$0xf]
        %v493 = vld [vmem:[%s400 + $0x80] sm:$0xf]
        %v494 = vld [vmem:[%s400 + $0x84] sm:$0xf]
        %v495 = vld [vmem:[%s400 + $0x88] sm:$0xf]
        %v496 = vld [vmem:[%s400 + $0x8c] sm:$0xf]
        %v497 = vld [vmem:[%s400 + $0x90] sm:$0xf]
        %v498 = vld [vmem:[%s400 + $0x94] sm:$0xf]
        %v499 = vld [vmem:[%s400 + $0x98] sm:$0xf]
        %v500 = vld [vmem:[%s400 + $0x9c] sm:$0xf]
        %v501 = vld [vmem:[%s400 + $0xa0] sm:$0xf]
        %v502 = vld [vmem:[%s400 + $0xa4] sm:$0xf]
        %v503 = vld [vmem:[%s400 + $0xa8] sm:$0xf]
        %v504 = vld [vmem:[%s400 + $0xac] sm:$0xf]
        %v505 = vld [vmem:[%s400 + $0xb0] sm:$0xf]
        %v506 = vld [vmem:[%s400 + $0xb4] sm:$0xf]
        %v507 = vld [vmem:[%s400 + $0xb8] sm:$0xf]
        %v508 = vld [vmem:[%s400 + $0xbc] sm:$0xf]
        %v509 = vld [vmem:[%s400 + $0xc0] sm:$0xf]
        %v510 = vld [vmem:[%s400 + $0xc4] sm:$0xf]
        %v511 = vld [vmem:[%s400 + $0xc8] sm:$0xf]
        %v512 = vld [vmem:[%s400 + $0xcc] sm:$0xf]
        %v513 = vld [vmem:[%s400 + $0xd0] sm:$0xf]
        %v514 = vld [vmem:[%s400 + $0xd4] sm:$0xf]
        %v515 = vld [vmem:[%s400 + $0xd8] sm:$0xf]
        %v516 = vld [vmem:[%s400 + $0xdc] sm:$0xf]
        %v517 = vld [vmem:[%s400 + $0xe0] sm:$0xf]
        %v518 = vld [vmem:[%s400 + $0xe4] sm:$0xf]
        %v519 = vld [vmem:[%s400 + $0xe8] sm:$0xf]
        %v520 = vld [vmem:[%s400 + $0xec] sm:$0xf]
        %v521 = vld [vmem:[%s400 + $0xf0] sm:$0xf]
        %v522 = vld [vmem:[%s400 + $0xf4] sm:$0xf]
        %v523 = vld [vmem:[%s400 + $0xf8] sm:$0xf]
        %v524 = vld [vmem:[%s400 + $0xfc] sm:$0xf]
        %v527 = vunpack.c.l.b16 %v459
        %v528 = vunpack.c.h.b16 %v459
        %v529 = vunpack.c.l.b16 %v460
        %v530 = vunpack.c.h.b16 %v460
        %v531 = vpack.c.b16 %v527, %v527
        %v532 = vpack.c.b16 %v528, %v528
        %v533 = vpack.c.b16 %v529, %v529
        %v534 = vpack.c.b16 %v530, %v530
        %v603 = vunpack.c.l.b16 %v461
        %v604 = vunpack.c.l.b16 %v462
        %v605 = vunpack.c.l.b16 %v463
        %v606 = vunpack.c.l.b16 %v464
        %v607 = vunpack.c.l.b16 %v465
        %v608 = vunpack.c.l.b16 %v466
        %v609 = vunpack.c.l.b16 %v467
        %v610 = vunpack.c.l.b16 %v468
        %v611 = vunpack.c.l.b16 %v469
        %v612 = vunpack.c.l.b16 %v470
        %v613 = vunpack.c.l.b16 %v471
        %v614 = vunpack.c.l.b16 %v472
        %v615 = vunpack.c.l.b16 %v473
        %v616 = vunpack.c.l.b16 %v474
        %v617 = vunpack.c.l.b16 %v475
        %v618 = vunpack.c.l.b16 %v476
        %v619 = vunpack.c.l.b16 %v477
        %v620 = vunpack.c.l.b16 %v478
        %v621 = vunpack.c.l.b16 %v479
        %v622 = vunpack.c.l.b16 %v480
        %v623 = vunpack.c.l.b16 %v481
        %v624 = vunpack.c.l.b16 %v482
        %v625 = vunpack.c.l.b16 %v483
        %v626 = vunpack.c.l.b16 %v484
        %v627 = vunpack.c.l.b16 %v485
        %v628 = vunpack.c.l.b16 %v486
        %v629 = vunpack.c.l.b16 %v487
        %v630 = vunpack.c.l.b16 %v488
        %v631 = vunpack.c.l.b16 %v489
        %v632 = vunpack.c.l.b16 %v490
        %v633 = vunpack.c.l.b16 %v491
        %v634 = vunpack.c.l.b16 %v492
        %v635 = vunpack.c.l.b16 %v493
        %v636 = vunpack.c.l.b16 %v494
        %v637 = vunpack.c.l.b16 %v495
        %v638 = vunpack.c.l.b16 %v496
        %v639 = vunpack.c.l.b16 %v497
        %v640 = vunpack.c.l.b16 %v498
        %v641 = vunpack.c.l.b16 %v499
        %v642 = vunpack.c.l.b16 %v500
        %v643 = vunpack.c.l.b16 %v501
        %v644 = vunpack.c.l.b16 %v502
        %v645 = vunpack.c.l.b16 %v503
        %v646 = vunpack.c.l.b16 %v504
        %v647 = vunpack.c.l.b16 %v505
        %v648 = vunpack.c.l.b16 %v506
        %v649 = vunpack.c.l.b16 %v507
        %v650 = vunpack.c.l.b16 %v508
        %v651 = vunpack.c.l.b16 %v509
        %v652 = vunpack.c.l.b16 %v510
        %v653 = vunpack.c.l.b16 %v511
        %v654 = vunpack.c.l.b16 %v512
        %v655 = vunpack.c.l.b16 %v513
        %v656 = vunpack.c.l.b16 %v514
        %v657 = vunpack.c.l.b16 %v515
        %v658 = vunpack.c.l.b16 %v516
        %v659 = vunpack.c.l.b16 %v517
        %v660 = vunpack.c.l.b16 %v518
        %v661 = vunpack.c.l.b16 %v519
        %v662 = vunpack.c.l.b16 %v520
        %v663 = vunpack.c.l.b16 %v521
        %v664 = vunpack.c.l.b16 %v522
        %v665 = vunpack.c.l.b16 %v523
        %v666 = vunpack.c.l.b16 %v524
        %v667 = vpack.c.b16 %v604, %v603
        %v668 = vpack.c.b16 %v606, %v605
        %v669 = vpack.c.b16 %v608, %v607
        %v670 = vpack.c.b16 %v610, %v609
        %v671 = vpack.c.b16 %v612, %v611
        %v672 = vpack.c.b16 %v614, %v613
        %v673 = vpack.c.b16 %v616, %v615
        %v674 = vpack.c.b16 %v618, %v617
        %v675 = vpack.c.b16 %v620, %v619
        %v676 = vpack.c.b16 %v622, %v621
        %v677 = vpack.c.b16 %v624, %v623
        %v678 = vpack.c.b16 %v626, %v625
        %v679 = vpack.c.b16 %v628, %v627
        %v680 = vpack.c.b16 %v630, %v629
        %v681 = vpack.c.b16 %v632, %v631
        %v682 = vpack.c.b16 %v634, %v633
        %v683 = vpack.c.b16 %v636, %v635
        %v684 = vpack.c.b16 %v638, %v637
        %v685 = vpack.c.b16 %v640, %v639
        %v686 = vpack.c.b16 %v642, %v641
        %v687 = vpack.c.b16 %v644, %v643
        %v688 = vpack.c.b16 %v646, %v645
        %v689 = vpack.c.b16 %v648, %v647
        %v690 = vpack.c.b16 %v650, %v649
        %v691 = vpack.c.b16 %v652, %v651
        %v692 = vpack.c.b16 %v654, %v653
        %v693 = vpack.c.b16 %v656, %v655
        %v694 = vpack.c.b16 %v658, %v657
        %v695 = vpack.c.b16 %v660, %v659
        %v696 = vpack.c.b16 %v662, %v661
        %v697 = vpack.c.b16 %v664, %v663
        %v698 = vpack.c.b16 %v666, %v665
        %731 = vmatpush.bf16.msra.mxu0 %v674
        %732 = vmatpush.bf16.msra.mxu0 %v673
        %733 = vmatpush.bf16.msra.mxu0 %v672
        %734 = vmatpush.bf16.msra.mxu0 %v671
        %735 = vmatpush.bf16.msra.mxu0 %v670
        %736 = vmatpush.bf16.msra.mxu0 %v669
        %737 = vmatpush.bf16.msra.mxu0 %v668
        %738 = vmatpush.bf16.msra.mxu0 %v667
        %739 = vmatmul.bf16.gmra.mxu0 %v531
        %v740 = vpop.f32.mrf.mxu0
        %v741 = vadd.f32 0.0, %v740
        %v742 = vpop.f32.mrf.mxu0
        %743 = vdwg.mxu0
        %744 = vmatpush.bf16.msra.mxu0 %v682
        %745 = vmatpush.bf16.msra.mxu0 %v681
        %746 = vmatpush.bf16.msra.mxu0 %v680
        %747 = vmatpush.bf16.msra.mxu0 %v679
        %748 = vmatpush.bf16.msra.mxu0 %v678
        %749 = vmatpush.bf16.msra.mxu0 %v677
        %750 = vmatpush.bf16.msra.mxu0 %v676
        %751 = vmatpush.bf16.msra.mxu0 %v675
        %752 = vmatmul.bf16.gmra.mxu0 %v532
        %v753 = vpop.f32.mrf.mxu0
        %v754 = vadd.f32 %v741, %v753
        %v755 = vpop.f32.mrf.mxu0
        %756 = vdwg.mxu0
        %757 = vmatpush.bf16.msra.mxu0 %v690
        %758 = vmatpush.bf16.msra.mxu0 %v689
        %759 = vmatpush.bf16.msra.mxu0 %v688
        %760 = vmatpush.bf16.msra.mxu0 %v687
        %761 = vmatpush.bf16.msra.mxu0 %v686
        %762 = vmatpush.bf16.msra.mxu0 %v685
        %763 = vmatpush.bf16.msra.mxu0 %v684
        %764 = vmatpush.bf16.msra.mxu0 %v683
        %765 = vmatmul.bf16.gmra.mxu0 %v533
        %v766 = vpop.f32.mrf.mxu0
        %v767 = vadd.f32 %v754, %v766
        %v768 = vpop.f32.mrf.mxu0
        %769 = vdwg.mxu0
        %770 = vmatpush.bf16.msra.mxu0 %v698
        %771 = vmatpush.bf16.msra.mxu0 %v697
        %772 = vmatpush.bf16.msra.mxu0 %v696
        %773 = vmatpush.bf16.msra.mxu0 %v695
        %774 = vmatpush.bf16.msra.mxu0 %v694
        %775 = vmatpush.bf16.msra.mxu0 %v693
        %776 = vmatpush.bf16.msra.mxu0 %v692
        %777 = vmatpush.bf16.msra.mxu0 %v691
        %778 = vmatmul.bf16.gmra.mxu0 %v534
        %v779 = vpop.f32.mrf.mxu0
        %v780 = vadd.f32 %v767, %v779
        %v781 = vpop.f32.mrf.mxu0
        %782 = vdwg.mxu0
        %v783 = vadd.f32 %v458, %v780
        %784 = vst [vmem:[#allocation2] sm:$0xff] %v783
        %p785 = scmp.eq.s32.totalorder %s33, 1
        // Predicated region
        $region81: #{tpu_custom_call.1} parent=55 // pred_check
          %p786 = pneg %p785
        $region82: #{tpu_custom_call.1} parent=55 // pred_check_branch
          %788 = sbr.rel (%p786) target = $region84
        $region83: #{tpu_custom_call.1} parent=55 // pred_region
          %v789 = vld [vmem:[#allocation2] sm:$0xff]
          %v790 = vld [vmem:[%s2] sm:$0x1]
          %v792 = vperm.slane %v790, 0
          %v794 = vadd.f32 %v789, %v792
          %v795 = vmax.f32 %v794, 0.0
          %v796 = vpack.c.bf16 %v795, %v795
          %v797 = vld [vmem:[#allocation8] sm:$0xf]
          %v798 = vld [vmem:[#allocation8 + $0x4] sm:$0xf]
          %v799 = vld [vmem:[#allocation8 + $0x8] sm:$0xf]
          %v800 = vld [vmem:[#allocation8 + $0xc] sm:$0xf]
          %v801 = vld [vmem:[#allocation8 + $0x10] sm:$0xf]
          %v802 = vld [vmem:[#allocation8 + $0x14] sm:$0xf]
          %v803 = vld [vmem:[#allocation8 + $0x18] sm:$0xf]
          %v804 = vld [vmem:[#allocation8 + $0x1c] sm:$0xf]
          %v805 = vld [vmem:[#allocation8 + $0x20] sm:$0xf]
          %v806 = vld [vmem:[#allocation8 + $0x24] sm:$0xf]
          %v807 = vld [vmem:[#allocation8 + $0x28] sm:$0xf]
          %v808 = vld [vmem:[#allocation8 + $0x2c] sm:$0xf]
          %v809 = vld [vmem:[#allocation8 + $0x30] sm:$0xf]
          %v810 = vld [vmem:[#allocation8 + $0x34] sm:$0xf]
          %v811 = vld [vmem:[#allocation8 + $0x38] sm:$0xf]
          %v812 = vld [vmem:[#allocation8 + $0x3c] sm:$0xf]
          %v813 = vld [vmem:[%s4] sm:$0x1]
          %v815 = vperm.slane %v813, 0
          %v833 = vunpack.c.l.b16 %v797
          %v834 = vunpack.c.l.b16 %v798
          %v835 = vunpack.c.l.b16 %v799
          %v836 = vunpack.c.l.b16 %v800
          %v837 = vunpack.c.l.b16 %v801
          %v838 = vunpack.c.l.b16 %v802
          %v839 = vunpack.c.l.b16 %v803
          %v840 = vunpack.c.l.b16 %v804
          %v841 = vunpack.c.l.b16 %v805
          %v842 = vunpack.c.l.b16 %v806
          %v843 = vunpack.c.l.b16 %v807
          %v844 = vunpack.c.l.b16 %v808
          %v845 = vunpack.c.l.b16 %v809
          %v846 = vunpack.c.l.b16 %v810
          %v847 = vunpack.c.l.b16 %v811
          %v848 = vunpack.c.l.b16 %v812
          %v849 = vpack.c.b16 %v834, %v833
          %v850 = vpack.c.b16 %v836, %v835
          %v851 = vpack.c.b16 %v838, %v837
          %v852 = vpack.c.b16 %v840, %v839
          %v853 = vpack.c.b16 %v842, %v841
          %v854 = vpack.c.b16 %v844, %v843
          %v855 = vpack.c.b16 %v846, %v845
          %v856 = vpack.c.b16 %v848, %v847
          %865 = vmatpush.bf16.msra.mxu0 %v856
          %866 = vmatpush.bf16.msra.mxu0 %v855
          %867 = vmatpush.bf16.msra.mxu0 %v854
          %868 = vmatpush.bf16.msra.mxu0 %v853
          %869 = vmatpush.bf16.msra.mxu0 %v852
          %870 = vmatpush.bf16.msra.mxu0 %v851
          %871 = vmatpush.bf16.msra.mxu0 %v850
          %872 = vmatpush.bf16.msra.mxu0 %v849
          %873 = vmatmul.bf16.gmra.mxu0 %v796
          %v874 = vpop.f32.mrf.mxu0
          %v875 = vadd.f32 %v815, %v874
          %v876 = vpop.f32.mrf.mxu0
          %877 = vdwg.mxu0
          %v878 = vmax.f32 %v875, 0.0
          %v879 = vpack.c.bf16 %v878, %v878
          %v880 = vld [vmem:[#allocation9] sm:$0xf]
          %v881 = vld [vmem:[#allocation9 + $0x4] sm:$0xf]
          %v882 = vld [vmem:[#allocation9 + $0x8] sm:$0xf]
          %v883 = vld [vmem:[#allocation9 + $0xc] sm:$0xf]
          %v884 = vld [vmem:[#allocation9 + $0x10] sm:$0xf]
          %v885 = vld [vmem:[#allocation9 + $0x14] sm:$0xf]
          %v886 = vld [vmem:[#allocation9 + $0x18] sm:$0xf]
          %v887 = vld [vmem:[#allocation9 + $0x1c] sm:$0xf]
          %v888 = vld [vmem:[#allocation9 + $0x20] sm:$0xf]
          %v889 = vld [vmem:[#allocation9 + $0x24] sm:$0xf]
          %v890 = vld [vmem:[#allocation9 + $0x28] sm:$0xf]
          %v891 = vld [vmem:[#allocation9 + $0x2c] sm:$0xf]
          %v892 = vld [vmem:[#allocation9 + $0x30] sm:$0xf]
          %v893 = vld [vmem:[#allocation9 + $0x34] sm:$0xf]
          %v894 = vld [vmem:[#allocation9 + $0x38] sm:$0xf]
          %v895 = vld [vmem:[#allocation9 + $0x3c] sm:$0xf]
          %v896 = vld [vmem:[%s6] sm:$0x1]
          %v898 = vperm.slane %v896, 0
          %v916 = vunpack.c.l.b16 %v880
          %v917 = vunpack.c.l.b16 %v881
          %v918 = vunpack.c.l.b16 %v882
          %v919 = vunpack.c.l.b16 %v883
          %v920 = vunpack.c.l.b16 %v884
          %v921 = vunpack.c.l.b16 %v885
          %v922 = vunpack.c.l.b16 %v886
          %v923 = vunpack.c.l.b16 %v887
          %v924 = vunpack.c.l.b16 %v888
          %v925 = vunpack.c.l.b16 %v889
          %v926 = vunpack.c.l.b16 %v890
          %v927 = vunpack.c.l.b16 %v891
          %v928 = vunpack.c.l.b16 %v892
          %v929 = vunpack.c.l.b16 %v893
          %v930 = vunpack.c.l.b16 %v894
          %v931 = vunpack.c.l.b16 %v895
          %v932 = vpack.c.b16 %v917, %v916
          %v933 = vpack.c.b16 %v919, %v918
          %v934 = vpack.c.b16 %v921, %v920
          %v935 = vpack.c.b16 %v923, %v922
          %v936 = vpack.c.b16 %v925, %v924
          %v937 = vpack.c.b16 %v927, %v926
          %v938 = vpack.c.b16 %v929, %v928
          %v939 = vpack.c.b16 %v931, %v930
          %948 = vmatpush.bf16.msra.mxu0 %v939
          %949 = vmatpush.bf16.msra.mxu0 %v938
          %950 = vmatpush.bf16.msra.mxu0 %v937
          %951 = vmatpush.bf16.msra.mxu0 %v936
          %952 = vmatpush.bf16.msra.mxu0 %v935
          %953 = vmatpush.bf16.msra.mxu0 %v934
          %954 = vmatpush.bf16.msra.mxu0 %v933
          %955 = vmatpush.bf16.msra.mxu0 %v932
          %956 = vmatmul.bf16.gmra.mxu0 %v879
          %v957 = vpop.f32.mrf.mxu0
          %v958 = vadd.f32 %v898, %v957
          %v959 = vpop.f32.mrf.mxu0
          %960 = vdwg.mxu0
          %v961 = vmax.f32 %v958, 0.0
          %v962 = vpack.c.bf16 %v961, %v961
          %v963 = vld [vmem:[#allocation11] sm:$0xf]
          %v964 = vld [vmem:[#allocation11 + $0x4] sm:$0xf]
          %v965 = vld [vmem:[#allocation11 + $0x8] sm:$0xf]
          %v966 = vld [vmem:[#allocation11 + $0xc] sm:$0xf]
          %v967 = vld [vmem:[#allocation11 + $0x10] sm:$0xf]
          %v968 = vld [vmem:[#allocation11 + $0x14] sm:$0xf]
          %v969 = vld [vmem:[#allocation11 + $0x18] sm:$0xf]
          %v970 = vld [vmem:[#allocation11 + $0x1c] sm:$0xf]
          %v971 = vld [vmem:[#allocation11 + $0x20] sm:$0xf]
          %v972 = vld [vmem:[#allocation11 + $0x24] sm:$0xf]
          %v973 = vld [vmem:[#allocation11 + $0x28] sm:$0xf]
          %v974 = vld [vmem:[#allocation11 + $0x2c] sm:$0xf]
          %v975 = vld [vmem:[#allocation11 + $0x30] sm:$0xf]
          %v976 = vld [vmem:[#allocation11 + $0x34] sm:$0xf]
          %v977 = vld [vmem:[#allocation11 + $0x38] sm:$0xf]
          %v978 = vld [vmem:[#allocation11 + $0x3c] sm:$0xf]
          %v979 = vld [vmem:[%s8] sm:$0x1]
          %v981 = vperm.slane %v979, 0
          %v999 = vunpack.c.l.b16 %v963
          %v1000 = vunpack.c.l.b16 %v964
          %v1001 = vunpack.c.l.b16 %v965
          %v1002 = vunpack.c.l.b16 %v966
          %v1003 = vunpack.c.l.b16 %v967
          %v1004 = vunpack.c.l.b16 %v968
          %v1005 = vunpack.c.l.b16 %v969
          %v1006 = vunpack.c.l.b16 %v970
          %v1007 = vunpack.c.l.b16 %v971
          %v1008 = vunpack.c.l.b16 %v972
          %v1009 = vunpack.c.l.b16 %v973
          %v1010 = vunpack.c.l.b16 %v974
          %v1011 = vunpack.c.l.b16 %v975
          %v1012 = vunpack.c.l.b16 %v976
          %v1013 = vunpack.c.l.b16 %v977
          %v1014 = vunpack.c.l.b16 %v978
          %v1015 = vpack.c.b16 %v1000, %v999
          %v1016 = vpack.c.b16 %v1002, %v1001
          %v1017 = vpack.c.b16 %v1004, %v1003
          %v1018 = vpack.c.b16 %v1006, %v1005
          %v1019 = vpack.c.b16 %v1008, %v1007
          %v1020 = vpack.c.b16 %v1010, %v1009
          %v1021 = vpack.c.b16 %v1012, %v1011
          %v1022 = vpack.c.b16 %v1014, %v1013
          %1031 = vmatpush.bf16.msra.mxu0 %v1022
          %1032 = vmatpush.bf16.msra.mxu0 %v1021
          %1033 = vmatpush.bf16.msra.mxu0 %v1020
          %1034 = vmatpush.bf16.msra.mxu0 %v1019
          %1035 = vmatpush.bf16.msra.mxu0 %v1018
          %1036 = vmatpush.bf16.msra.mxu0 %v1017
          %1037 = vmatpush.bf16.msra.mxu0 %v1016
          %1038 = vmatpush.bf16.msra.mxu0 %v1015
          %1039 = vmatmul.bf16.gmra.mxu0 %v962
          %v1040 = vpop.f32.mrf.mxu0
          %v1041 = vadd.f32 %v981, %v1040
          %v1042 = vpop.f32.mrf.mxu0
          %1043 = vdwg.mxu0
          %v1044 = vlaneseq
          %v1045 = vand.u32 %v1044, 127
          %vm1046 = vcmp.lt.s32.totalorder %v1045, 16
          %v1047 = vmul.f32 %v1041, %v1041
          %v1048 = vsel %vm1046, %v1047, 0.0
          %1049 = vadd.xlane.f32.xlu0 %v1048
          %v1050 = vpop.xlane.xlu0 %1049
          %v1051 = vmax.f32 %v1050, 1e-24
          %v1052 = vrsqrt.pop %v1051
          %v1053 = vmul.f32 %v1052, %v1051
          %v1054 = vmul.f32 %v1053, %v1052
          %v1055 = vmul.f32 0.5, %v1054
          %v1056 = vsub.f32 1.5, %v1055
          %v1057 = vmul.f32 %v1052, %v1056
          %vm1058 = vweird.f32 %v1051
          %vm1059 = vweird.f32 %v1052
          %vm1060 = vmor %vm1058, %vm1059
          %v1061 = vsel %vm1060, %v1052, %v1057
          %v1062 = vmul.f32 %v1041, %v1061
          %v1063 = vsel %vm1046, %v1062, %v1041
          %1064 = vst [vmem:[#allocation12] sm:$0xff] %v1063
        $region84: #{tpu_custom_call.1} parent=55 // pred_fallthru
          _
        // Predicated region
        $region85: #{tpu_custom_call.1} parent=55 // pred_check
          %p1065 = pneg %p259
        $region86: #{tpu_custom_call.1} parent=55 // pred_check_branch
          %1067 = sbr.rel (%p1065) target = $region88
        $region87: #{tpu_custom_call.1} parent=55 // pred_region
          %1069 = vsyncadd [#allocation5], 0
          %s1070 = smul.addr %s32, 8
          %s1071 = scalar_lea.hbm %s9, %s1070
          %s1073 = sshll.u32 [#allocation12], 4
          %s1074 = int_to_ptr.vmem [resolvable:$true] %s1073
          %s1075 = sshll.u32 %s1071, 4
          %s1076 = int_to_ptr.hbm [resolvable:$true] %s1075
          %1078 = dma.vmem_to_hbm [thread:$0]  %s1074, 128, %s1076, [#allocation5]
        $region88: #{tpu_custom_call.1} parent=55 // pred_fallthru
          _
        // Predicated region
        $region89: #{tpu_custom_call.1} parent=55 // pred_check
          %p1079 = pneg %p259
        $region90: #{tpu_custom_call.1} parent=55 // pred_check_branch
          %1081 = sbr.rel (%p1079) target = $region92
        $region91: #{tpu_custom_call.1} parent=55 // pred_region
          %1083 = dma.done [#allocation5], 128
        $region92: #{tpu_custom_call.1} parent=55 // pred_fallthru
          _
      $region56: #{tpu_custom_call.1} parent=5 // pred_fallthru
        _
      %p1084 = scmp.le.s32.totalorder 2, %s23
      // Predicated region
      $region93: #{tpu_custom_call.1} parent=5 // pred_check
        %p1085 = pneg %p1084
      $region94: #{tpu_custom_call.1} parent=5 // pred_check_branch
        %1087 = sbr.rel (%p1085) target = $region96
      $region95: #{tpu_custom_call.1} parent=5 // pred_region
        %s1088 = ssub.s32 %s23, 2
      $region96: #{tpu_custom_call.1} parent=5 // pred_fallthru
        _
    $region6: #{tpu_custom_call.1} parent=1 // loop_footer
      %s27 = sadd.s32 1, %s23
    $region7: #{tpu_custom_call.1} parent=1 // loop_footer_branch
      %22 = sbr.rel target = $region3
    $region8: #{tpu_custom_call.1} parent=1 // loop_exit
      _
    %1089 = vsyncpa [#allocation4], 1
    %s1090 = scalar_lea.sflag [#allocation4], 1
    %1091 = vsyncpa %s1090, 1
    %1092 = vsyncpa [#allocation7], 1
    %s1093 = scalar_lea.sflag [#allocation7], 1
    %1094 = vsyncpa %s1093, 1
    %1095 = vsyncpa [#allocation10], 1
    %1096 = vsyncpa [#allocation5], 1
    %s1097 = scalar_lea.sflag [#allocation5], 1
    %1098 = vsyncpa %s1097, 1

</llo_original>
